<compile_context>
chip_gen: v7x
topology: tpu7x:2x2x1
jax: 0.10.0
libtpu: 0.0.40
codegen_flags: <defaults>
</compile_context>

<pallas_src>
import jax
import jax.numpy as jnp
from jax.experimental import pallas as pl
from jax.experimental.pallas import tpu as pltpu


def _ann_conv1x1_kernel(x_ref, w_ref, scale_ref, bias_ref, o_ref):
    # x_ref     : (C1p, TILE_HW)  -- one batch element, one spatial tile (leading dim squeezed)
    # w_ref     : (C2p, C1p)      -- 1x1 conv weight (resident in VMEM, constant index_map)
    # scale_ref : (C2p, 1)        -- folded BN scale  = gamma / sqrt(var + eps)
    # bias_ref  : (C2p, 1)        -- folded BN bias   = beta - mean * scale
    # o_ref     : (C2p, TILE_HW)
    x = jnp.maximum(x_ref[...], 0.0).astype(jnp.float32)          # ReLU ("lif")
    acc = jnp.dot(w_ref[...].astype(jnp.float32), x,
                  preferred_element_type=jnp.float32)              # (C2p, TILE_HW) on MXU
    o_ref[...] = (acc * scale_ref[...] + bias_ref[...]).astype(o_ref.dtype)


def _round_up(v, m):
    return ((v + m - 1) // m) * m


def _pick_spatial_tile(hw, c_rows, itemsize, budget_bytes=2 * 1024 * 1024):
    """Largest multiple-of-128 divisor of hw whose (c_rows x tile) block fits the budget."""
    if hw % 128 != 0:
        return hw  # block last dim == full array dim is always legal
    max_lanes = max(128, (budget_bytes // max(1, c_rows * itemsize)) // 128 * 128)
    tile = min(hw, max_lanes)
    while hw % tile != 0:
        tile -= 128
    return tile


def ann_conv_forward(x, w, gamma, beta, running_mean, running_var, *, stride=1, eps=1e-5):
    """Fused ReLU -> 1x1 conv (no bias) -> BatchNorm(eval) for x of shape (T, B, C1, H, W).

    w is the Conv2d weight with the trailing 1x1 spatial dims squeezed: shape (C2, C1).
    """
    if stride != 1:
        raise NotImplementedError("TODO(synk): only the module-default 1x1, stride-1 path is lowered")

    T, B, C1, H, W = x.shape
    C2 = w.shape[0]
    HW = H * W
    TB = T * B

    # Fold eval-mode BatchNorm into per-output-channel scale and bias.
    scale = (gamma / jnp.sqrt(running_var + eps)).astype(jnp.float32)   # (C2,)
    bias = (beta - running_mean * scale).astype(jnp.float32)            # (C2,)

    # Pad channel dims up to sublane multiples of 8 (no-op for typical channel counts).
    C1p = _round_up(C1, 8)
    C2p = _round_up(C2, 8)

    x2 = x.reshape(TB, C1, HW)
    if C1p != C1:
        x2 = jnp.pad(x2, ((0, 0), (0, C1p - C1), (0, 0)))
    wp = jnp.zeros((C2p, C1p), jnp.float32).at[:C2, :C1].set(w.astype(jnp.float32))
    scale_p = jnp.zeros((C2p, 1), jnp.float32).at[:C2, 0].set(scale)
    bias_p = jnp.zeros((C2p, 1), jnp.float32).at[:C2, 0].set(bias)

    tile_hw = _pick_spatial_tile(HW, max(C1p, C2p), jnp.dtype(x.dtype).itemsize)
    grid = (TB, HW // tile_hw)

    out = pl.pallas_call(
        _ann_conv1x1_kernel,
        out_shape=jax.ShapeDtypeStruct((TB, C2p, HW), x.dtype),
        grid_spec=pltpu.PrefetchScalarGridSpec(
            num_scalar_prefetch=0,
            grid=grid,
            in_specs=[
                # activation tile: one (batch, spatial-tile) block, lane-dense last dim
                pl.BlockSpec((pl.Squeezed(), C1p, tile_hw), lambda n, j: (n, 0, j)),
                # weight / BN params: constant index_map -> fetched once, resident in VMEM
                pl.BlockSpec((C2p, C1p), lambda n, j: (0, 0)),
                pl.BlockSpec((C2p, 1), lambda n, j: (0, 0)),
                pl.BlockSpec((C2p, 1), lambda n, j: (0, 0)),
            ],
            out_specs=pl.BlockSpec((pl.Squeezed(), C2p, tile_hw), lambda n, j: (n, 0, j)),
        ),
        compiler_params=pltpu.CompilerParams(
            dimension_semantics=("parallel", "parallel"),
        ),
    )(x2, wp, scale_p, bias_p)

    out = out[:, :C2, :]                       # drop channel padding (no-op if C2 % 8 == 0)
    return out.reshape(T, B, C2, H, W)


if __name__ == "__main__":
    # Ann_Conv(c1=4, c2=4) with default k=1, s=1; input (T, B, C, H, W) = (4, 2, 4, 16, 16).
    T, B, C1, C2, H, W = 4, 2, 4, 4, 16, 16
    key = jax.random.PRNGKey(0)
    kx, kw, kg, kb, km, kv = jax.random.split(key, 6)

    x = jax.random.normal(kx, (T, B, C1, H, W), dtype=jnp.float32)
    w = 0.1 * jax.random.normal(kw, (C2, C1), dtype=jnp.float32)          # Conv2d 1x1 weight
    gamma = 1.0 + 0.1 * jax.random.normal(kg, (C2,), dtype=jnp.float32)   # BN weight
    beta = 0.1 * jax.random.normal(kb, (C2,), dtype=jnp.float32)          # BN bias
    running_mean = 0.1 * jax.random.normal(km, (C2,), dtype=jnp.float32)
    running_var = jax.random.uniform(kv, (C2,), dtype=jnp.float32, minval=0.5, maxval=1.5)

    out = ann_conv_forward(x, w, gamma, beta, running_mean, running_var)
    out = jax.block_until_ready(out)

    # Pure-JAX reference: ReLU -> 1x1 conv -> eval-mode BN.
    eps = 1e-5
    scale_ref = gamma / jnp.sqrt(running_var + eps)
    bias_ref = beta - running_mean * scale_ref
    xr = jnp.maximum(x, 0.0)
    ref = jnp.einsum("tbchw,oc->tbohw", xr, w)
    ref = ref * scale_ref[None, None, :, None, None] + bias_ref[None, None, :, None, None]

    assert out.shape == (T, B, C2, H, W), out.shape
    assert out.dtype == x.dtype
    assert jnp.allclose(out, ref, atol=1e-5, rtol=1e-5), float(jnp.max(jnp.abs(out - ref)))

    print("KERNEL_OK")
</pallas_src>

<mosaic_0001>
module attributes {stable_mosaic.version = 11 : i64} {
  func.func @_ann_conv1x1_kernel(%arg0: i32, %arg1: i32, %arg2: memref<1x8x256xf32, #tpu.memory_space<vmem>>, %arg3: memref<8x8xf32, #tpu.memory_space<vmem>>, %arg4: memref<8x1xf32, #tpu.memory_space<vmem>>, %arg5: memref<8x1xf32, #tpu.memory_space<vmem>>, %arg6: memref<1x8x256xf32, #tpu.memory_space<vmem>>) attributes {dimension_semantics = [#tpu.dimension_semantics<parallel>, #tpu.dimension_semantics<parallel>], iteration_bounds = array<i64: 8, 1>, scalar_prefetch = 0 : i64, scratch_operands = 0 : i64, tpu.core_type = #tpu.core_type<tc>, window_params = [{transform_indices = @transform_0, window_bounds = array<i64: 1, 8, 256>}, {pipeline_mode = #tpu.pipeline_mode<synchronous>, transform_indices = @transform_1, window_bounds = array<i64: 8, 8>}, {pipeline_mode = #tpu.pipeline_mode<synchronous>, transform_indices = @transform_2, window_bounds = array<i64: 8, 1>}, {pipeline_mode = #tpu.pipeline_mode<synchronous>, transform_indices = @transform_3, window_bounds = array<i64: 8, 1>}, {transform_indices = @transform_4, window_bounds = array<i64: 1, 8, 256>}]} {
    %c0 = arith.constant 0 : index
    %c0_0 = arith.constant 0 : index
    %c0_1 = arith.constant 0 : index
    %0 = vector.load %arg2[%c0, %c0_0, %c0_1] : memref<1x8x256xf32, #tpu.memory_space<vmem>>, vector<1x8x256xf32>
    %1 = vector.shape_cast %0 : vector<1x8x256xf32> to vector<8x256xf32>
    %cst = arith.constant 0.000000e+00 : f32
    %2 = vector.broadcast %cst : f32 to vector<8x256xf32>
    %3 = arith.maximumf %1, %2 : vector<8x256xf32>
    %c0_2 = arith.constant 0 : index
    %c0_3 = arith.constant 0 : index
    %4 = vector.load %arg3[%c0_2, %c0_3] : memref<8x8xf32, #tpu.memory_space<vmem>>, vector<8x8xf32>
    %cst_4 = arith.constant dense<0.000000e+00> : vector<8x256xf32>
    %5 = tpu.matmul %4, %3, %cst_4 {dimension_numbers = #tpu.dot_dimension_numbers<[1], [0], [0], [1], [0, 0, 1, 1], [], []>} : vector<8x8xf32>, vector<8x256xf32>, vector<8x256xf32> -> vector<8x256xf32>
    %c0_5 = arith.constant 0 : index
    %c0_6 = arith.constant 0 : index
    %6 = vector.load %arg4[%c0_5, %c0_6] : memref<8x1xf32, #tpu.memory_space<vmem>>, vector<8x1xf32>
    %7 = vector.broadcast %6 : vector<8x1xf32> to vector<8x256xf32>
    %8 = arith.mulf %5, %7 : vector<8x256xf32>
    %c0_7 = arith.constant 0 : index
    %c0_8 = arith.constant 0 : index
    %9 = vector.load %arg5[%c0_7, %c0_8] : memref<8x1xf32, #tpu.memory_space<vmem>>, vector<8x1xf32>
    %10 = vector.broadcast %9 : vector<8x1xf32> to vector<8x256xf32>
    %11 = arith.addf %8, %10 : vector<8x256xf32>
    %c0_9 = arith.constant 0 : index
    %c0_10 = arith.constant 0 : index
    %c0_11 = arith.constant 0 : index
    %12 = vector.load %arg6[%c0_9, %c0_10, %c0_11] : memref<1x8x256xf32, #tpu.memory_space<vmem>>, vector<1x8x256xf32>
    %13 = vector.shape_cast %12 : vector<1x8x256xf32> to vector<8x256xf32>
    %14 = vector.shape_cast %11 : vector<8x256xf32> to vector<1x8x256xf32>
    tpu.vector_store %arg6[%c0_9, %c0_10, %c0_11], %14 {strides = array<i32>} : memref<1x8x256xf32, #tpu.memory_space<vmem>>, vector<1x8x256xf32>,
    return
  }
  func.func @transform_0(%arg0: i32, %arg1: i32) -> (i32, i32, i32) {
    %c0_i32 = arith.constant 0 : i32
    %c0_i32_0 = arith.constant 0 : i32
    return %arg0, %c0_i32, %arg1 : i32, i32, i32
  }
  func.func @transform_1(%arg0: i32, %arg1: i32) -> (i32, i32) {
    %c0_i32 = arith.constant 0 : i32
    %c0_i32_0 = arith.constant 0 : i32
    %c0_i32_1 = arith.constant 0 : i32
    return %c0_i32, %c0_i32_0 : i32, i32
  }
  func.func @transform_2(%arg0: i32, %arg1: i32) -> (i32, i32) {
    %c0_i32 = arith.constant 0 : i32
    %c0_i32_0 = arith.constant 0 : i32
    %c0_i32_1 = arith.constant 0 : i32
    return %c0_i32, %c0_i32_0 : i32, i32
  }
  func.func @transform_3(%arg0: i32, %arg1: i32) -> (i32, i32) {
    %c0_i32 = arith.constant 0 : i32
    %c0_i32_0 = arith.constant 0 : i32
    %c0_i32_1 = arith.constant 0 : i32
    return %c0_i32, %c0_i32_0 : i32, i32
  }
  func.func @transform_4(%arg0: i32, %arg1: i32) -> (i32, i32, i32) {
    %c0_i32 = arith.constant 0 : i32
    %c0_i32_0 = arith.constant 0 : i32
    return %arg0, %c0_i32, %arg1 : i32, i32, i32
  }
}

</mosaic_0001>

<llo_original>
// kernel: tpu_custom_call.1
$region0: #{tpu_custom_call.1}
  #allocation0 [shape = 'u32[]', space=smem, size = 0x4, offset = 0x4, fixed_abs, tag = 'smem constant byte address 0x4 - core index']
  #allocation1 [shape = 'u32[144,128]{1,0:T(1,128)}', space=vmem, size = 0x12000, scoped, tag = 'internal scratch']
  %s0 = inlined_call_operand.hbm [shape: f32[8,8,256], index: 0, kind: input, shape index: {}]
  %s1 = inlined_call_operand.vmem [shape: f32[8,8], index: 1, kind: input, shape index: {}]
  %s2 = inlined_call_operand.vmem [shape: f32[8,1], index: 2, kind: input, shape index: {}]
  %s3 = inlined_call_operand.vmem [shape: f32[8,1], index: 3, kind: input, shape index: {}]
  %s4 = inlined_call_operand.hbm [shape: f32[8,8,256], index: 4, kind: output, shape index: {}]
  %s5 = sld [smem:[#allocation0]]
  $region53: #{tpu_custom_call.1} parent=0
    _
  %s7 = ssub.s32 1, %s5
  %s8 = scalar_select 0, %s7, %s5
  $region1: #{tpu_custom_call.1} parent=0
    #allocation2 [shape = 'u8[16384]{0}', space=vmem, size = 0x4000, scoped, tag = 'input window, operand 0']
    #allocation3 [shape = 's32[2]{0}', space=sflag, size = 0x8, scoped, tag = 'scoped memory for tpu_custom_call.1']
    #allocation4 [shape = 's32[2]{0}', space=sflag, size = 0x8, scoped, tag = 'scoped memory for tpu_custom_call.1']
    #allocation5 [shape = 'u8[16384]{0}', space=vmem, size = 0x4000, scoped, tag = 'output window, operand 0']
    %9 = vsyncpa [#allocation3], 0
    %s10 = scalar_lea.sflag [#allocation3], 1
    %11 = vsyncpa %s10, 0
    %12 = vsyncpa [#allocation4], 0
    %s13 = scalar_lea.sflag [#allocation4], 1
    %14 = vsyncpa %s13, 0
    loop: start=0, step=1, limit=10
    $region2: #{tpu_custom_call.1} parent=1 // loop_pre_header
      _
    $region3: #{tpu_custom_call.1} parent=1 // loop_header
      %s16 = sphi 0, %s20
      %p17 = scmp.ge.s32.totalorder %s16, 10
      %s23 = sphi 0, %s35
      %s24 = sphi 0, %s31
      %s25 = sphi 0, %s23
      %s26 = sphi 0, %s24
      %s27 = sphi 0, %s25
      %s28 = sphi 0, %s26
      %s40 = sphi 0, %s42
      %s43 = sphi 0, %s40
      %s44 = sphi 0, %s43
      %s60 = sphi 0, %s44
      %s64 = sphi 0, %s64
      %s66 = sphi 0, %s64
      %s67 = sphi 0, %s66
      %s81 = sphi 0, %s67
      %s85 = sphi 0, %s85
      %s87 = sphi 0, %s85
      %s88 = sphi 0, %s87
      %s102 = sphi 0, %s88
      %s106 = sphi 0, %s106
      %s108 = sphi 0, %s106
      %s109 = sphi 0, %s108
      %s123 = sphi 0, %s109
      %s131 = sphi 0, %s133
      %s134 = sphi 0, %s131
      %s135 = sphi 0, %s134
      %s151 = sphi 0, %s135
    $region4: #{tpu_custom_call.1} parent=1 // loop_header_branch
      %19 = sbr.rel (%p17) target = $region8
    $region5: #{tpu_custom_call.1} parent=1 // loop_body
      %s21 = ssub.s32 %s16, 1
      %s22 = ssub.s32 %s16, 2
      %s29 = sadd.s32 1, %s24
      %p30 = scmp.ge.s32.totalorder %s29, 1
      %s31 = scalar_select %p30, 0, %s29
      %s32 = sadd.s32 1, %s23
      %s33 = scalar_select %p30, %s32, %s23
      %p34 = scmp.ge.s32.totalorder %s33, 8
      %s35 = scalar_select %p34, 0, %s33
      %s36 = ssub.s32 %s23, %s35
      %s37 = ssub.s32 %s24, %s31
      %s38 = sor.u32 %s36, %s37
      %p39 = scmp.eq.s32.totalorder %s38, 0
      %s41 = sadd.s32 %s40, 1
      %s42 = scalar_select %p39, %s40, %s41
      %p45 = pneg %p39
      %p46 = scmp.eq.s32.totalorder %s16, 7
      %p47 = por %p45, %p46
      %p48 = scmp.ne.s32.totalorder %s40, %s43
      %p49 = scmp.eq.s32.totalorder %s16, 0
      %p50 = por %p48, %p49
      %p51 = scmp.ne.s32.totalorder %s40, %s43
      %p52 = scmp.eq.s32.totalorder %s21, 7
      %p53 = por %p51, %p52
      %p54 = scmp.ne.s32.totalorder %s43, %s44
      %p55 = scmp.eq.s32.totalorder %s21, 0
      %p56 = por %p54, %p55
      %p57 = scmp.ne.s32.totalorder %s43, %s44
      %p58 = scmp.eq.s32.totalorder %s22, 7
      %p59 = por %p57, %p58
      %p61 = scmp.ne.s32.totalorder %s44, %s60
      %p62 = scmp.eq.s32.totalorder %s22, 0
      %p63 = por %p61, %p62
      %s65 = sadd.s32 %s64, 1
      %p68 = scmp.eq.s32.totalorder %s16, 7
      %p69 = scmp.ne.s32.totalorder %s64, %s66
      %p70 = scmp.eq.s32.totalorder %s16, 0
      %p71 = por %p69, %p70
      %p72 = scmp.ne.s32.totalorder %s64, %s66
      %p73 = scmp.eq.s32.totalorder %s21, 7
      %p74 = por %p72, %p73
      %p75 = scmp.ne.s32.totalorder %s66, %s67
      %p76 = scmp.eq.s32.totalorder %s21, 0
      %p77 = por %p75, %p76
      %p78 = scmp.ne.s32.totalorder %s66, %s67
      %p79 = scmp.eq.s32.totalorder %s22, 7
      %p80 = por %p78, %p79
      %p82 = scmp.ne.s32.totalorder %s67, %s81
      %p83 = scmp.eq.s32.totalorder %s22, 0
      %p84 = por %p82, %p83
      %s86 = sadd.s32 %s85, 1
      %p89 = scmp.eq.s32.totalorder %s16, 7
      %p90 = scmp.ne.s32.totalorder %s85, %s87
      %p91 = scmp.eq.s32.totalorder %s16, 0
      %p92 = por %p90, %p91
      %p93 = scmp.ne.s32.totalorder %s85, %s87
      %p94 = scmp.eq.s32.totalorder %s21, 7
      %p95 = por %p93, %p94
      %p96 = scmp.ne.s32.totalorder %s87, %s88
      %p97 = scmp.eq.s32.totalorder %s21, 0
      %p98 = por %p96, %p97
      %p99 = scmp.ne.s32.totalorder %s87, %s88
      %p100 = scmp.eq.s32.totalorder %s22, 7
      %p101 = por %p99, %p100
      %p103 = scmp.ne.s32.totalorder %s88, %s102
      %p104 = scmp.eq.s32.totalorder %s22, 0
      %p105 = por %p103, %p104
      %s107 = sadd.s32 %s106, 1
      %p110 = scmp.eq.s32.totalorder %s16, 7
      %p111 = scmp.ne.s32.totalorder %s106, %s108
      %p112 = scmp.eq.s32.totalorder %s16, 0
      %p113 = por %p111, %p112
      %p114 = scmp.ne.s32.totalorder %s106, %s108
      %p115 = scmp.eq.s32.totalorder %s21, 7
      %p116 = por %p114, %p115
      %p117 = scmp.ne.s32.totalorder %s108, %s109
      %p118 = scmp.eq.s32.totalorder %s21, 0
      %p119 = por %p117, %p118
      %p120 = scmp.ne.s32.totalorder %s108, %s109
      %p121 = scmp.eq.s32.totalorder %s22, 7
      %p122 = por %p120, %p121
      %p124 = scmp.ne.s32.totalorder %s109, %s123
      %p125 = scmp.eq.s32.totalorder %s22, 0
      %p126 = por %p124, %p125
      %s127 = ssub.s32 %s23, %s35
      %s128 = ssub.s32 %s24, %s31
      %s129 = sor.u32 %s127, %s128
      %p130 = scmp.eq.s32.totalorder %s129, 0
      %s132 = sadd.s32 %s131, 1
      %s133 = scalar_select %p130, %s131, %s132
      %p136 = pneg %p130
      %p137 = scmp.eq.s32.totalorder %s16, 7
      %p138 = por %p136, %p137
      %p139 = scmp.ne.s32.totalorder %s131, %s134
      %p140 = scmp.eq.s32.totalorder %s16, 0
      %p141 = por %p139, %p140
      %p142 = scmp.ne.s32.totalorder %s131, %s134
      %p143 = scmp.eq.s32.totalorder %s21, 7
      %p144 = por %p142, %p143
      %p145 = scmp.ne.s32.totalorder %s134, %s135
      %p146 = scmp.eq.s32.totalorder %s21, 0
      %p147 = por %p145, %p146
      %p148 = scmp.ne.s32.totalorder %s134, %s135
      %p149 = scmp.eq.s32.totalorder %s22, 7
      %p150 = por %p148, %p149
      %p152 = scmp.ne.s32.totalorder %s135, %s151
      %p153 = scmp.eq.s32.totalorder %s22, 0
      %p154 = por %p152, %p153
      %p155 = scmp.le.s32.totalorder 1, %s16
      %p156 = scmp.lt.s32.totalorder %s16, 9
      %p157 = pnand %p155, %p156
      %p158 = pneg %p157
      // Predicated region
      $region9: #{tpu_custom_call.1} parent=5 // pred_check
        _
      $region10: #{tpu_custom_call.1} parent=5 // pred_check_branch
        %160 = sbr.rel (%p157) target = $region12
      $region11: #{tpu_custom_call.1} parent=5 // pred_region
        %s161 = ssub.s32 %s16, 1
        // Predicated region
        $region13: #{tpu_custom_call.1} parent=11 // pred_check
          %p162 = pneg %p77
        $region14: #{tpu_custom_call.1} parent=11 // pred_check_branch
          %164 = sbr.rel (%p162) target = $region16
        $region15: #{tpu_custom_call.1} parent=11 // pred_region
          _
        $region16: #{tpu_custom_call.1} parent=11 // pred_fallthru
          _
        // Predicated region
        $region17: #{tpu_custom_call.1} parent=11 // pred_check
          %p165 = pneg %p98
        $region18: #{tpu_custom_call.1} parent=11 // pred_check_branch
          %167 = sbr.rel (%p165) target = $region20
        $region19: #{tpu_custom_call.1} parent=11 // pred_region
          _
        $region20: #{tpu_custom_call.1} parent=11 // pred_fallthru
          _
        // Predicated region
        $region21: #{tpu_custom_call.1} parent=11 // pred_check
          %p168 = pneg %p119
        $region22: #{tpu_custom_call.1} parent=11 // pred_check_branch
          %170 = sbr.rel (%p168) target = $region24
        $region23: #{tpu_custom_call.1} parent=11 // pred_region
          _
        $region24: #{tpu_custom_call.1} parent=11 // pred_fallthru
          _
      $region12: #{tpu_custom_call.1} parent=5 // pred_fallthru
        _
      %p171 = scmp.lt.s32.totalorder %s16, 8
      // Predicated region
      $region25: #{tpu_custom_call.1} parent=5 // pred_check
        %p172 = pneg %p171
      $region26: #{tpu_custom_call.1} parent=5 // pred_check_branch
        %174 = sbr.rel (%p172) target = $region28
      $region27: #{tpu_custom_call.1} parent=5 // pred_region
        // Predicated region
        $region29: #{tpu_custom_call.1} parent=27 // pred_check
          %p175 = pneg %p50
        $region30: #{tpu_custom_call.1} parent=27 // pred_check_branch
          %177 = sbr.rel (%p175) target = $region32
        $region31: #{tpu_custom_call.1} parent=27 // pred_region
          %s178 = sand.u32 %s40, 1
          %s179 = scalar_lea.sflag [#allocation3], %s178
          %s180 = sand.u32 %s40, 1
          %s181 = smul.addr %s180, 16
          %s182 = scalar_lea.vmem [#allocation2], %s181
          %s183 = smul.u32 2, %s24
          %s185 = ssub.s32 256, 256
          %186 = vsyncadd %s179, %s185
          %s187 = smul.addr %s23, 2
          %s188 = sadd.s32 %s183, %s187
          %s189 = smul.addr %s188, 128
          %s190 = scalar_lea.hbm %s0, %s189
          %s192 = sshll.u32 %s182, 4
          %s193 = int_to_ptr.vmem [resolvable:$true] %s192
          %195 = dma.hbm_to_vmem [thread:$0]  %s190, 256, %s193, %s179
        $region32: #{tpu_custom_call.1} parent=27 // pred_fallthru
          _
      $region28: #{tpu_custom_call.1} parent=5 // pred_fallthru
        _
      %p196 = scmp.le.s32.totalorder 1, %s16
      %p197 = scmp.lt.s32.totalorder %s16, 9
      %p198 = pnand %p196, %p197
      %p199 = pneg %p198
      // Predicated region
      $region33: #{tpu_custom_call.1} parent=5 // pred_check
        _
      $region34: #{tpu_custom_call.1} parent=5 // pred_check_branch
        %201 = sbr.rel (%p198) target = $region36
      $region35: #{tpu_custom_call.1} parent=5 // pred_region
        %s202 = ssub.s32 %s16, 1
        %s203 = sand.u32 %s43, 1
        %s204 = scalar_lea.sflag [#allocation3], %s203
        %s205 = sand.u32 %s43, 1
        %s206 = smul.addr %s205, 16
        %s207 = scalar_lea.vmem [#allocation2], %s206
        // Predicated region
        $region37: #{tpu_custom_call.1} parent=35 // pred_check
          %p208 = pneg %p56
        $region38: #{tpu_custom_call.1} parent=35 // pred_check_branch
          %210 = sbr.rel (%p208) target = $region40
        $region39: #{tpu_custom_call.1} parent=35 // pred_region
          %211 = dma.done %s204, 256
        $region40: #{tpu_custom_call.1} parent=35 // pred_fallthru
          _
        %s212 = sand.u32 %s43, 1
        %s213 = scalar_lea.sflag [#allocation3], %s212
        %s214 = sand.u32 %s43, 1
        %s215 = smul.addr %s214, 16
        %s216 = scalar_lea.vmem [#allocation2], %s215
        %p217 = pneg %p56
        %p218 = pneg %p53
        %p219 = pneg %p77
        %p220 = pneg %p74
        %p221 = pneg %p98
        %p222 = pneg %p95
        %p223 = pneg %p119
        %p224 = pneg %p116
        %p225 = pneg %p147
        %p226 = pneg %p144
        %s227 = sand.u32 %s134, 1
        %s228 = scalar_lea.sflag [#allocation4], %s227
        %s229 = sand.u32 %s134, 1
        %s230 = smul.addr %s229, 16
        %s231 = scalar_lea.vmem [#allocation5], %s230
        %s232 = smul.u32 2, %s26
        %s233 = smul.u32 2, %s26
        %v234 = vld [vmem:[%s207] sm:$0xff]
        %v235 = vld [vmem:[%s207 + $0x8] sm:$0xff]
        %v236 = vmax.f32 %v234, 0.0
        %v237 = vmax.f32 %v235, 0.0
        %v238 = vld [vmem:[%s1] sm:$0xff]
        %vm239 = vcmask 64512
        %v241 = vsel %vm239, %v238, 0
        %243 = vmatprep.subr.mxu0 %v237
        %244 = vmatpush1.msra.mxu0 %v236
        %245 = vmatprep.subr.mxu0 0.0
        %246 = vmatpush1.msra.mxu0 0.0
        %247 = vmatprep.subr.mxu0 0.0
        %248 = vmatpush1.msra.mxu0 0.0
        %249 = vmatprep.subr.mxu0 0.0
        %250 = vmatpush1.msra.mxu0 0.0
        %251 = vmatprep.subr.mxu0 0.0
        %252 = vmatpush1.msra.mxu0 0.0
        %253 = vmatprep.subr.mxu0 0.0
        %254 = vmatpush1.msra.mxu0 0.0
        %255 = vmatprep.subr.mxu0 0.0
        %256 = vmatpush1.msra.mxu0 0.0
        %257 = vmatprep.subr.mxu0 0.0
        %258 = vmatpush1.msra.mxu0 0.0
        %259 = vmatprep.subr.mxu0 0.0
        %260 = vmatpush1.msra.mxu0 0.0
        %261 = vmatprep.subr.mxu0 0.0
        %262 = vmatpush1.msra.mxu0 0.0
        %263 = vmatprep.subr.mxu0 0.0
        %264 = vmatpush1.msra.mxu0 0.0
        %265 = vmatprep.subr.mxu0 0.0
        %266 = vmatpush1.msra.mxu0 0.0
        %267 = vmatprep.subr.mxu0 0.0
        %268 = vmatpush1.msra.mxu0 0.0
        %269 = vmatprep.subr.mxu0 0.0
        %270 = vmatpush1.msra.mxu0 0.0
        %271 = vmatprep.subr.mxu0 0.0
        %272 = vmatpush1.msra.mxu0 0.0
        %273 = vmatprep.subr.mxu0 0.0
        %274 = vmatpush1.msra.mxu0 0.0
        %275 = vmatprep.subr.mxu0 0.0
        %276 = vmatpush1.msra.mxu0 0.0
        %277 = vmatprep.subr.mxu0 0.0
        %278 = vmatpush1.msra.mxu0 0.0
        %279 = vmatprep.subr.mxu0 0.0
        %280 = vmatpush1.msra.mxu0 0.0
        %281 = vmatprep.subr.mxu0 0.0
        %282 = vmatpush1.msra.mxu0 0.0
        %283 = vmatprep.subr.mxu0 0.0
        %284 = vmatpush1.msra.mxu0 0.0
        %285 = vmatprep.subr.mxu0 0.0
        %286 = vmatpush1.msra.mxu0 0.0
        %287 = vmatprep.subr.mxu0 0.0
        %288 = vmatpush1.msra.mxu0 0.0
        %289 = vmatprep.subr.mxu0 0.0
        %290 = vmatpush1.msra.mxu0 0.0
        %291 = vmatprep.subr.mxu0 0.0
        %292 = vmatpush1.msra.mxu0 0.0
        %293 = vmatprep.subr.mxu0 0.0
        %294 = vmatpush1.msra.mxu0 0.0
        %295 = vmatprep.subr.mxu0 0.0
        %296 = vmatpush1.msra.mxu0 0.0
        %297 = vmatprep.subr.mxu0 0.0
        %298 = vmatpush1.msra.mxu0 0.0
        %299 = vmatprep.subr.mxu0 0.0
        %300 = vmatpush1.msra.mxu0 0.0
        %301 = vmatprep.subr.mxu0 0.0
        %302 = vmatpush1.msra.mxu0 0.0
        %303 = vmatprep.subr.mxu0 0.0
        %304 = vmatpush1.msra.mxu0 0.0
        %305 = vmatprep.subr.mxu0 0.0
        %306 = vmatpush1.msra.mxu0 0.0
        %307 = vmatprep.mubr.f32.mxu0 0.0
        %308 = vmatmul.mubr.f32.gmra.mrb[0].mxu0 %v241
        %v309 = vpop.f32.mrb[0].mxu0
        %v310 = vadd.f32 0.0, %v309
        %v311 = vpop.f32.mrb[0].mxu0
        %v312 = vadd.f32 0.0, %v311
        %313 = vdwg.mxu0
        %v314 = vld [vmem:[%s2] sm:$0xff]
        %316 = vset.pattern.permute.xlu0 0
        %317 = vperm.xlu0 %316, %v314
        %v318 = vpop.permute.xlu0 %317
        %v320 = vmul.f32 %v310, %v318
        %v321 = vmul.f32 %v312, %v318
        %v322 = vld [vmem:[%s3] sm:$0xff]
        %324 = vset.pattern.permute.xlu0 0
        %325 = vperm.xlu0 %324, %v322
        %v326 = vpop.permute.xlu0 %325
        %v328 = vadd.f32 %v320, %v326
        %v329 = vadd.f32 %v321, %v326
        %330 = vst [vmem:[%s231] sm:$0xff] %v328
        %331 = vst [vmem:[%s231 + $0x8] sm:$0xff] %v329
        %s332 = sand.u32 %s134, 1
        %s333 = scalar_lea.sflag [#allocation4], %s332
        %s334 = sand.u32 %s134, 1
        %s335 = smul.addr %s334, 16
        %s336 = scalar_lea.vmem [#allocation5], %s335
        // Predicated region
        $region41: #{tpu_custom_call.1} parent=35 // pred_check
          %p337 = pneg %p144
        $region42: #{tpu_custom_call.1} parent=35 // pred_check_branch
          %339 = sbr.rel (%p337) target = $region44
        $region43: #{tpu_custom_call.1} parent=35 // pred_region
          %s340 = smul.u32 2, %s26
          %s342 = ssub.s32 256, 256
          %343 = vsyncadd %s333, %s342
          %s344 = smul.addr %s25, 2
          %s345 = sadd.s32 %s340, %s344
          %s346 = smul.addr %s345, 128
          %s347 = scalar_lea.hbm %s4, %s346
          %s349 = sshll.u32 %s336, 4
          %s350 = int_to_ptr.vmem [resolvable:$true] %s349
          %352 = dma.vmem_to_hbm [thread:$0]  %s350, 256, %s347, %s333
        $region44: #{tpu_custom_call.1} parent=35 // pred_fallthru
          _
      $region36: #{tpu_custom_call.1} parent=5 // pred_fallthru
        _
      %p353 = scmp.le.s32.totalorder 2, %s16
      // Predicated region
      $region45: #{tpu_custom_call.1} parent=5 // pred_check
        %p354 = pneg %p353
      $region46: #{tpu_custom_call.1} parent=5 // pred_check_branch
        %356 = sbr.rel (%p354) target = $region48
      $region47: #{tpu_custom_call.1} parent=5 // pred_region
        %s357 = ssub.s32 %s16, 2
        // Predicated region
        $region49: #{tpu_custom_call.1} parent=47 // pred_check
          %p358 = pneg %p150
        $region50: #{tpu_custom_call.1} parent=47 // pred_check_branch
          %360 = sbr.rel (%p358) target = $region52
        $region51: #{tpu_custom_call.1} parent=47 // pred_region
          %s361 = sand.u32 %s135, 1
          %s362 = scalar_lea.sflag [#allocation4], %s361
          %s363 = sand.u32 %s135, 1
          %s364 = smul.addr %s363, 16
          %s365 = scalar_lea.vmem [#allocation5], %s364
          %366 = dma.done %s362, 256
        $region52: #{tpu_custom_call.1} parent=47 // pred_fallthru
          _
      $region48: #{tpu_custom_call.1} parent=5 // pred_fallthru
        _
    $region6: #{tpu_custom_call.1} parent=1 // loop_footer
      %s20 = sadd.s32 1, %s16
    $region7: #{tpu_custom_call.1} parent=1 // loop_footer_branch
      %15 = sbr.rel target = $region3
    $region8: #{tpu_custom_call.1} parent=1 // loop_exit
      _
    %367 = vsyncpa [#allocation3], 1
    %s368 = scalar_lea.sflag [#allocation3], 1
    %369 = vsyncpa %s368, 1
    %370 = vsyncpa [#allocation4], 1
    %s371 = scalar_lea.sflag [#allocation4], 1
    %372 = vsyncpa %s371, 1

</llo_original>
